<compile_context>
chip_gen: v6e
topology: v6e:2x2x1
jax: 0.10.0
libtpu: 0.0.40
codegen_flags: <defaults>
</compile_context>

<pallas_src>
import functools

import numpy as np
import jax
import jax.numpy as jnp
from jax import lax
from jax.experimental import pallas as pl
from jax.experimental.pallas import tpu as pltpu


_SMALL_N_THRESHOLD = 64                    # below this, plain XLA beats launch cost
_X_TILE_BUDGET_BYTES = 20 * 1024 * 1024    # double-buffered x-tile budget
_VMEM_LIMIT_BYTES = 40 * 1024 * 1024       # < 64 MiB/TC (v7x), << 128 MiB (v5e/v6e)


def _bf16_valu_available():
    """bf16 elementwise VPU throughput exists on v6e and later generations."""
    try:
        kind = jax.devices()[0].device_kind.lower()
    except Exception:
        return True
    return not any(tag in kind for tag in ("v2", "v3", "v4", "v5"))


def _choose_tile_rows(n, itemsize, override=None):
    """Row-tile size: multiple of 32 (bf16 sublane packing), <= n, within budget."""
    cap = max(32, (n // 32) * 32)          # Pallas path only runs for n >= 64
    if override is not None:
        tm = max(32, (int(override) // 32) * 32)
    else:
        budget_rows = _X_TILE_BUDGET_BYTES // (2 * itemsize * max(n, 1))
        tm = max(32, (budget_rows // 32) * 32)
    return min(tm, cap)


def _mmrl_kernel(*refs, n, tm, inner_tiles, use_mask, w_same, w_diff,
                 inv_nn, has_ragged, compute_dtype):
    """Row-tiled max-margin ranking loss, 2-way row split on the parallel axis.

    refs (use_mask=True):  d_row_m, d_col_m, g_row, g_col, x, out, acc
    refs (use_mask=False): d_row_m, d_col_m,               x, out, acc
    """
    if use_mask:
        d_row_ref, d_col_ref, g_row_ref, g_col_ref, x_ref, out_ref, acc_ref = refs
    else:
        d_row_ref, d_col_ref, x_ref, out_ref, acc_ref = refs
        g_row_ref = g_col_ref = None

    c = pl.program_id(0)   # "parallel": row-half -> its own TensorCore on v7x
    i = pl.program_id(1)   # "arbitrary": row tiles inside this half

    # Per-core accumulator; re-initialised at the start of each half, so it is
    # correct whether the halves run on two cores (v7x) or serially on one.
    @pl.when(i == 0)
    def _init():
        acc_ref[...] = jnp.zeros_like(acc_ref)

    x = x_ref[...]
    if x.dtype != compute_dtype:
        x = x.astype(compute_dtype)

    # Margin is folded into the diagonal vectors in the wrapper:
    #   mm = relu(x - (d_row - margin)) + relu(x - (d_col - margin))
    mm = jnp.maximum(x - d_row_ref[...], 0) + jnp.maximum(x - d_col_ref[...], 0)

    if use_mask:
        w_s = jnp.array(w_same, dtype=compute_dtype)
        w_d = jnp.array(w_diff, dtype=compute_dtype)
        mm = mm * jnp.where(g_row_ref[...] == g_col_ref[...], w_s, w_d)

    # Logical first row of this tile.  For duplicated / overflow tiles (odd tile
    # count under the 2-way split) the index_map clamps the DMA while this value
    # keeps growing, so the validity mask below zeroes their contribution.
    row_start = (c * inner_tiles + i) * tm

    if has_ragged:
        is_full = row_start + tm <= n

        @pl.when(is_full)
        def _acc_full():
            acc_ref[...] += jnp.sum(mm.astype(jnp.float32), axis=0, keepdims=True)

        @pl.when(jnp.logical_not(is_full))
        def _acc_ragged():
            rows = row_start + lax.broadcasted_iota(jnp.int32, (tm, 1), 0)
            mmz = jnp.where(rows < n, mm, jnp.zeros_like(mm))
            acc_ref[...] += jnp.sum(mmz.astype(jnp.float32), axis=0, keepdims=True)
    else:
        acc_ref[...] += jnp.sum(mm.astype(jnp.float32), axis=0, keepdims=True)

    # Single cross-lane reduce per half, at the last inner step only.
    @pl.when(i == inner_tiles - 1)
    def _finalize():
        total = jnp.sum(acc_ref[...]) * inv_nn
        out_ref[...] = jnp.full(out_ref.shape, total, dtype=jnp.float32)


class MaxMarginRankingLossPallas:
    """JAX/Pallas port of MaxMarginRankingLoss (CLIP4Clip)."""

    def __init__(self, margin=1.0, negative_weighting=False, batch_size=1,
                 n_pair=1, hard_negative_rate=0.5, tile_rows=None,
                 bf16_compute=None):
        self.margin = float(margin)
        self.n_pair = int(n_pair)
        self.batch_size = int(batch_size)
        easy_negative_rate = 1 - hard_negative_rate
        self.easy_negative_rate = easy_negative_rate
        self.negative_weighting = negative_weighting
        self.tile_rows = tile_rows
        self._bf16_compute = bf16_compute   # None -> auto-detect at first call

        self.mm_mask = None
        self.w_same = 1.0
        self.w_diff = 1.0
        if n_pair > 1 and batch_size > 1:
            alpha = easy_negative_rate / ((batch_size - 1) * (1 - easy_negative_rate))
            scale = batch_size * (1 - easy_negative_rate)
            # Per-entry weights used by the kernel (same values as the kron mask).
            self.w_same = float(scale)
            self.w_diff = float(alpha * scale)
            # Keep the explicit mask as a module parameter (reference / parity).
            mm_mask = (1 - alpha) * np.eye(batch_size) + alpha
            mm_mask = np.kron(mm_mask, np.ones((n_pair, n_pair)))
            mm_mask = mm_mask * scale
            self.mm_mask = jnp.asarray(mm_mask, dtype=jnp.float32)

    def __call__(self, x):
        n = x.shape[0]
        assert x.shape == (n, n), "MaxMarginRankingLoss expects a square similarity matrix"
        use_mask = bool(self.negative_weighting and self.n_pair > 1 and self.batch_size > 1)

        if n < _SMALL_N_THRESHOLD:
            # Launch overhead dominates at tiny N; fused XLA path is faster.
            xf = x.astype(jnp.float32)
            d = jnp.diagonal(xf)
            mm = (jax.nn.relu(self.margin + xf - d[:, None]) +
                  jax.nn.relu(self.margin + xf - d[None, :]))
            if use_mask:
                grp = jnp.arange(n, dtype=jnp.int32) // self.n_pair
                w = jnp.where(grp[:, None] == grp[None, :], self.w_same, self.w_diff)
                mm = mm * w
            return jnp.mean(mm)

        if self._bf16_compute is None:
            self._bf16_compute = _bf16_valu_available()
        compute_dtype = (jnp.bfloat16
                         if (x.dtype == jnp.bfloat16 and self._bf16_compute)
                         else jnp.float32)

        tm = _choose_tile_rows(n, x.dtype.itemsize, self.tile_rows)
        total_tiles = pl.cdiv(n, tm)
        num_split = 2 if total_tiles >= 2 else 1   # 2-TC split on v7x; harmless on 1-TC chips
        inner_tiles = pl.cdiv(total_tiles, num_split)
        has_ragged = (n % tm != 0) or (num_split * inner_tiles != total_tiles)
        grid = (num_split, inner_tiles)

        def row_block(c, i):
            rb = c * inner_tiles + i
            # Clamp overflow tiles so the DMA stays in-bounds; their contribution
            # is zeroed in-kernel via the row-validity mask.
            return jnp.minimum(rb, total_tiles - 1)

        # Diagonal computed once in the wrapper, margin folded in, fed as tiny
        # (n,1)/(1,n) vectors in the kernel's compute dtype.
        d_m = (jnp.diagonal(x).astype(jnp.float32) - self.margin).astype(compute_dtype)
        d_row_m = d_m.reshape(n, 1)
        d_col_m = d_m.reshape(1, n)

        operands = [d_row_m, d_col_m]
        in_specs = [
            pl.BlockSpec((tm, 1), lambda c, i: (row_block(c, i), 0)),   # per-tile diag chunk
            pl.BlockSpec((1, n), lambda c, i: (0, 0)),                  # resident col diag
        ]
        if use_mask:
            grp = jnp.arange(n, dtype=jnp.int32) // self.n_pair        # int32 group ids
            operands += [grp.reshape(n, 1), grp.reshape(1, n)]
            in_specs += [
                pl.BlockSpec((tm, 1), lambda c, i: (row_block(c, i), 0)),
                pl.BlockSpec((1, n), lambda c, i: (0, 0)),
            ]
        operands.append(x)                                              # streamed in its own dtype
        in_specs.append(pl.BlockSpec((tm, n), lambda c, i: (row_block(c, i), 0)))

        kernel = functools.partial(
            _mmrl_kernel,
            n=n, tm=tm, inner_tiles=inner_tiles, use_mask=use_mask,
            w_same=self.w_same, w_diff=self.w_diff,
            inv_nn=1.0 / float(n * n),
            has_ragged=has_ragged, compute_dtype=compute_dtype,
        )

        # Per-split partial sums go to an (8,128)-aligned lane-dense block each
        # (avoids sub-tile output stores); the wrapper sums the scalars.
        out = pl.pallas_call(
            kernel,
            out_shape=jax.ShapeDtypeStruct((num_split, 8, 128), jnp.float32),
            grid=grid,
            in_specs=in_specs,
            out_specs=pl.BlockSpec((1, 8, 128), lambda c, i: (c, 0, 0)),
            scratch_shapes=[pltpu.VMEM((1, n), jnp.float32)],
            compiler_params=pltpu.CompilerParams(
                dimension_semantics=("parallel", "arbitrary"),
                vmem_limit_bytes=_VMEM_LIMIT_BYTES,
            ),
        )(*operands)
        return jnp.sum(out[:, 0, 0])


def _reference_loss(x, margin, mask):
    """f32 reference matching the PyTorch module."""
    xf = x.astype(jnp.float32)
    d = jnp.diag(xf)
    mm = jax.nn.relu(margin + xf - d[:, None]) + jax.nn.relu(margin + xf - d[None, :])
    if mask is not None:
        mm = mm * mask
    return jnp.mean(mm)


def _reference_loss_matched(x, margin, n_pair, use_mask, w_same, w_diff, compute_dtype):
    """Reference mirroring the kernel's dtype choices (hinge/mask in compute_dtype)."""
    d_m = (jnp.diagonal(x).astype(jnp.float32) - margin).astype(compute_dtype)
    xc = x.astype(compute_dtype)
    mm = (jnp.maximum(xc - d_m.reshape(-1, 1), 0) +
          jnp.maximum(xc - d_m.reshape(1, -1), 0))
    if use_mask:
        g = jnp.arange(x.shape[0], dtype=jnp.int32) // n_pair
        w = jnp.where(g[:, None] == g[None, :],
                      jnp.array(w_same, dtype=compute_dtype),
                      jnp.array(w_diff, dtype=compute_dtype))
        mm = mm * w
    return jnp.mean(mm.astype(jnp.float32))


if __name__ == "__main__":
    key = jax.random.PRNGKey(0)
    k1, k2, k3, k4 = jax.random.split(key, 4)

    # Case 1: negative weighting on, N = batch_size * n_pair = 16 * 8 = 128, f32.
    # Forced tm=32 so the grid is (2, 2): exercises the 2-way core split, no ragged tail.
    bs1, np1 = 16, 8
    n1 = bs1 * np1
    x1 = jax.random.normal(k1, (n1, n1), dtype=jnp.float32)
    m1 = MaxMarginRankingLossPallas(margin=1.0, negative_weighting=True,
                                    batch_size=bs1, n_pair=np1,
                                    hard_negative_rate=0.5, tile_rows=32)
    loss1 = jax.block_until_ready(m1(x1))
    ref1 = jax.block_until_ready(_reference_loss(x1, m1.margin, m1.mm_mask))
    assert jnp.allclose(loss1, ref1, rtol=1e-4, atol=1e-5), (loss1, ref1)

    # Case 2: no weighting, N=200 (not (8,128)-aligned), default tiling
    # (tm=192 -> grid (2,1), second half ragged): split + gated tail masking.
    n2 = 200
    x2 = jax.random.normal(k2, (n2, n2), dtype=jnp.float32)
    m2 = MaxMarginRankingLossPallas(margin=1.0, negative_weighting=False,
                                    batch_size=1, n_pair=1)
    loss2 = jax.block_until_ready(m2(x2))
    ref2 = jax.block_until_ready(_reference_loss(x2, m2.margin, None))
    assert jnp.allclose(loss2, ref2, rtol=1e-4, atol=1e-5), (loss2, ref2)

    # Case 2b: N=160, forced tm=64 -> 3 row tiles (odd), so the second half gets a
    # duplicated/overflow tile: exercises index clamping + full-tile masking.
    n2b = 160
    x2b = jax.random.normal(k4, (n2b, n2b), dtype=jnp.float32)
    m2b = MaxMarginRankingLossPallas(margin=1.0, negative_weighting=False,
                                     batch_size=1, n_pair=1, tile_rows=64)
    loss2b = jax.block_until_ready(m2b(x2b))
    ref2b = jax.block_until_ready(_reference_loss(x2b, m2b.margin, None))
    assert jnp.allclose(loss2b, ref2b, rtol=1e-4, atol=1e-5), (loss2b, ref2b)

    # Case 3: bf16 input on the Pallas path (bf16 hinge/mask math on bf16-capable
    # VPUs, f32 accumulation).  Check against a dtype-matched reference (tight)
    # and the f32 reference (loose, bf16 rounding of inputs/weights).
    x1_bf16 = x1.astype(jnp.bfloat16)
    loss_bf = jax.block_until_ready(m1(x1_bf16))
    ct = jnp.bfloat16 if m1._bf16_compute else jnp.float32
    ref_bf_matched = jax.block_until_ready(_reference_loss_matched(
        x1_bf16, m1.margin, np1, True, m1.w_same, m1.w_diff, ct))
    ref_bf_f32 = jax.block_until_ready(_reference_loss(x1_bf16, m1.margin, m1.mm_mask))
    assert jnp.allclose(loss_bf, ref_bf_matched, rtol=2e-3, atol=2e-3), (loss_bf, ref_bf_matched)
    assert jnp.allclose(loss_bf, ref_bf_f32, rtol=2e-2, atol=2e-2), (loss_bf, ref_bf_f32)

    # Case 4: tiny N=8 -> plain-JAX fallback path (batch=4, n_pair=2).
    bs3, np3 = 4, 2
    n3 = bs3 * np3
    x3 = jax.random.normal(k3, (n3, n3), dtype=jnp.float32)
    m3 = MaxMarginRankingLossPallas(margin=1.0, negative_weighting=True,
                                    batch_size=bs3, n_pair=np3, hard_negative_rate=0.5)
    loss3 = jax.block_until_ready(m3(x3))
    ref3 = jax.block_until_ready(_reference_loss(x3, m3.margin, m3.mm_mask))
    assert jnp.allclose(loss3, ref3, rtol=1e-4, atol=1e-5), (loss3, ref3)

    print("KERNEL_OK")
</pallas_src>

<mosaic_0001>
module attributes {stable_mosaic.version = 11 : i64} {
  func.func @_mmrl_kernel(%arg0: i32, %arg1: i32, %arg2: memref<32x1xf32, #tpu.memory_space<vmem>>, %arg3: memref<1x128xf32, #tpu.memory_space<vmem>>, %arg4: memref<32x1xi32, #tpu.memory_space<vmem>>, %arg5: memref<1x128xi32, #tpu.memory_space<vmem>>, %arg6: memref<32x128xf32, #tpu.memory_space<vmem>>, %arg7: memref<1x8x128xf32, #tpu.memory_space<vmem>>, %arg8: memref<1x128xf32, #tpu.memory_space<vmem>>) attributes {dimension_semantics = [#tpu.dimension_semantics<parallel>, #tpu.dimension_semantics<arbitrary>], iteration_bounds = array<i64: 2, 2>, scalar_prefetch = 0 : i64, scratch_operands = 1 : i64, tpu.core_type = #tpu.core_type<tc>, window_params = [{transform_indices = @transform_0, window_bounds = array<i64: 32, 1>}, {pipeline_mode = #tpu.pipeline_mode<synchronous>, transform_indices = @transform_1, window_bounds = array<i64: 1, 128>}, {transform_indices = @transform_2, window_bounds = array<i64: 32, 1>}, {pipeline_mode = #tpu.pipeline_mode<synchronous>, transform_indices = @transform_3, window_bounds = array<i64: 1, 128>}, {transform_indices = @transform_4, window_bounds = array<i64: 32, 128>}, {transform_indices = @transform_5, window_bounds = array<i64: 1, 8, 128>}]} {
    %c0_i32 = arith.constant 0 : i32
    %0 = arith.cmpi eq, %arg1, %c0_i32 : i32
    %1 = arith.extui %0 : i1 to i32
    %c0_i32_0 = arith.constant 0 : i32
    %2 = arith.cmpi ne, %1, %c0_i32_0 : i32
    scf.if %2 {
      %cst_19 = arith.constant 0.000000e+00 : f32
      %32 = vector.broadcast %cst_19 : f32 to vector<1x128xf32>
      %c0_20 = arith.constant 0 : index
      %c0_21 = arith.constant 0 : index
      %33 = vector.load %arg8[%c0_20, %c0_21] : memref<1x128xf32, #tpu.memory_space<vmem>>, vector<1x128xf32>
      tpu.vector_store %arg8[%c0_20, %c0_21], %32 {strides = array<i32>} : memref<1x128xf32, #tpu.memory_space<vmem>>, vector<1x128xf32>,
    } else {
    }
    %c0 = arith.constant 0 : index
    %c0_1 = arith.constant 0 : index
    %3 = vector.load %arg6[%c0, %c0_1] : memref<32x128xf32, #tpu.memory_space<vmem>>, vector<32x128xf32>
    %c0_2 = arith.constant 0 : index
    %c0_3 = arith.constant 0 : index
    %4 = vector.load %arg2[%c0_2, %c0_3] : memref<32x1xf32, #tpu.memory_space<vmem>>, vector<32x1xf32>
    %5 = vector.broadcast %4 : vector<32x1xf32> to vector<32x128xf32>
    %6 = arith.subf %3, %5 : vector<32x128xf32>
    %cst = arith.constant 0.000000e+00 : f32
    %7 = vector.broadcast %cst : f32 to vector<32x128xf32>
    %8 = arith.maximumf %6, %7 : vector<32x128xf32>
    %c0_4 = arith.constant 0 : index
    %c0_5 = arith.constant 0 : index
    %9 = vector.load %arg3[%c0_4, %c0_5] : memref<1x128xf32, #tpu.memory_space<vmem>>, vector<1x128xf32>
    %10 = vector.broadcast %9 : vector<1x128xf32> to vector<32x128xf32>
    %11 = arith.subf %3, %10 : vector<32x128xf32>
    %cst_6 = arith.constant 0.000000e+00 : f32
    %12 = vector.broadcast %cst_6 : f32 to vector<32x128xf32>
    %13 = arith.maximumf %11, %12 : vector<32x128xf32>
    %14 = arith.addf %8, %13 : vector<32x128xf32>
    %c0_7 = arith.constant 0 : index
    %c0_8 = arith.constant 0 : index
    %15 = vector.load %arg4[%c0_7, %c0_8] : memref<32x1xi32, #tpu.memory_space<vmem>>, vector<32x1xi32>
    %c0_9 = arith.constant 0 : index
    %c0_10 = arith.constant 0 : index
    %16 = vector.load %arg5[%c0_9, %c0_10] : memref<1x128xi32, #tpu.memory_space<vmem>>, vector<1x128xi32>
    %17 = vector.broadcast %15 : vector<32x1xi32> to vector<32x128xi32>
    %18 = vector.broadcast %16 : vector<1x128xi32> to vector<32x128xi32>
    %19 = arith.cmpi eq, %17, %18 : vector<32x128xi32>
    %cst_11 = arith.constant 8.000000e+00 : f32
    %cst_12 = arith.constant 0.533333361 : f32
    %20 = vector.broadcast %cst_11 : f32 to vector<32x128xf32>
    %21 = vector.broadcast %cst_12 : f32 to vector<32x128xf32>
    %22 = arith.select %19, %20, %21 : vector<32x128xi1>, vector<32x128xf32>
    %23 = arith.mulf %14, %22 : vector<32x128xf32>
    %c0_13 = arith.constant 0 : index
    %c0_14 = arith.constant 0 : index
    %24 = vector.load %arg8[%c0_13, %c0_14] : memref<1x128xf32, #tpu.memory_space<vmem>>, vector<1x128xf32>
    %cst_15 = arith.constant dense<0.000000e+00> : vector<128xf32>
    %25 = vector.multi_reduction <add>, %23, %cst_15 [0] : vector<32x128xf32> to vector<128xf32>
    %26 = vector.shape_cast %25 : vector<128xf32> to vector<1x128xf32>
    %27 = arith.addf %24, %26 : vector<1x128xf32>
    %c0_16 = arith.constant 0 : index
    %c0_17 = arith.constant 0 : index
    %28 = vector.load %arg8[%c0_16, %c0_17] : memref<1x128xf32, #tpu.memory_space<vmem>>, vector<1x128xf32>
    tpu.vector_store %arg8[%c0_16, %c0_17], %27 {strides = array<i32>} : memref<1x128xf32, #tpu.memory_space<vmem>>, vector<1x128xf32>,
    %c1_i32 = arith.constant 1 : i32
    %29 = arith.cmpi eq, %arg1, %c1_i32 : i32
    %30 = arith.extui %29 : i1 to i32
    %c0_i32_18 = arith.constant 0 : i32
    %31 = arith.cmpi ne, %30, %c0_i32_18 : i32
    scf.if %31 {
      %c0_19 = arith.constant 0 : index
      %c0_20 = arith.constant 0 : index
      %32 = vector.load %arg8[%c0_19, %c0_20] : memref<1x128xf32, #tpu.memory_space<vmem>>, vector<1x128xf32>
      %33 = vector.shape_cast %32 : vector<1x128xf32> to vector<1x1x128xf32>
      %cst_21 = arith.constant dense<0.000000e+00> : vector<1xf32>
      %34 = vector.multi_reduction <add>, %33, %cst_21 [1, 2] : vector<1x1x128xf32> to vector<1xf32>
      %35 = vector.shape_cast %34 : vector<1xf32> to vector<1x1x1xf32>
      %36 = vector.extract %35[0, 0, 0] : f32 from vector<1x1x1xf32>
      %cst_22 = arith.constant 6.10351563E-5 : f32
      %37 = arith.mulf %36, %cst_22 : f32
      %38 = vector.broadcast %37 : f32 to vector<1x8x128xf32>
      %c0_23 = arith.constant 0 : index
      %c0_24 = arith.constant 0 : index
      %c0_25 = arith.constant 0 : index
      %39 = vector.load %arg7[%c0_23, %c0_24, %c0_25] : memref<1x8x128xf32, #tpu.memory_space<vmem>>, vector<1x8x128xf32>
      tpu.vector_store %arg7[%c0_23, %c0_24, %c0_25], %38 {strides = array<i32>} : memref<1x8x128xf32, #tpu.memory_space<vmem>>, vector<1x8x128xf32>,
    } else {
    }
    return
  }
  func.func @transform_0(%arg0: i32, %arg1: i32) -> (i32, i32) {
    %c2_i32 = arith.constant 2 : i32
    %0 = arith.muli %arg0, %c2_i32 : i32
    %1 = arith.addi %0, %arg1 : i32
    %c3_i32 = arith.constant 3 : i32
    %2 = arith.minsi %1, %c3_i32 : i32
    %c0_i32 = arith.constant 0 : i32
    %c0_i32_0 = arith.constant 0 : i32
    return %2, %c0_i32 : i32, i32
  }
  func.func @transform_1(%arg0: i32, %arg1: i32) -> (i32, i32) {
    %c0_i32 = arith.constant 0 : i32
    %c0_i32_0 = arith.constant 0 : i32
    %c0_i32_1 = arith.constant 0 : i32
    return %c0_i32, %c0_i32_0 : i32, i32
  }
  func.func @transform_2(%arg0: i32, %arg1: i32) -> (i32, i32) {
    %c2_i32 = arith.constant 2 : i32
    %0 = arith.muli %arg0, %c2_i32 : i32
    %1 = arith.addi %0, %arg1 : i32
    %c3_i32 = arith.constant 3 : i32
    %2 = arith.minsi %1, %c3_i32 : i32
    %c0_i32 = arith.constant 0 : i32
    %c0_i32_0 = arith.constant 0 : i32
    return %2, %c0_i32 : i32, i32
  }
  func.func @transform_3(%arg0: i32, %arg1: i32) -> (i32, i32) {
    %c0_i32 = arith.constant 0 : i32
    %c0_i32_0 = arith.constant 0 : i32
    %c0_i32_1 = arith.constant 0 : i32
    return %c0_i32, %c0_i32_0 : i32, i32
  }
  func.func @transform_4(%arg0: i32, %arg1: i32) -> (i32, i32) {
    %c2_i32 = arith.constant 2 : i32
    %0 = arith.muli %arg0, %c2_i32 : i32
    %1 = arith.addi %0, %arg1 : i32
    %c3_i32 = arith.constant 3 : i32
    %2 = arith.minsi %1, %c3_i32 : i32
    %c0_i32 = arith.constant 0 : i32
    %c0_i32_0 = arith.constant 0 : i32
    return %2, %c0_i32 : i32, i32
  }
  func.func @transform_5(%arg0: i32, %arg1: i32) -> (i32, i32, i32) {
    %c0_i32 = arith.constant 0 : i32
    %c0_i32_0 = arith.constant 0 : i32
    %c0_i32_1 = arith.constant 0 : i32
    return %arg0, %c0_i32, %c0_i32_0 : i32, i32, i32
  }
}

</mosaic_0001>

<llo_original>
// kernel: tpu_custom_call.1
$region0: #{tpu_custom_call.1}
  #allocation0 [shape = 'u32[]', space=smem, size = 0x4, offset = 0x4, fixed_abs, tag = 'smem constant byte address 0x4 - core index']
  #allocation1 [shape = 'u32[144,128]{1,0:T(1,128)}', space=vmem, size = 0x12000, scoped, tag = 'internal scratch']
  #allocation2 [shape = 'f32[1,128]{1,0:T(1,128)}', space=vmem, size = 0x200, scoped, tag = 'scratch operand']
  %s0 = inlined_call_operand.vmem [shape: f32[128,1], index: 0, kind: input, shape index: {}]
  %s1 = inlined_call_operand.vmem [shape: f32[1,128], index: 1, kind: input, shape index: {}]
  %s2 = inlined_call_operand.vmem [shape: s32[128,1], index: 2, kind: input, shape index: {}]
  %s3 = inlined_call_operand.vmem [shape: s32[1,128], index: 3, kind: input, shape index: {}]
  %s4 = inlined_call_operand.vmem [shape: f32[128,128], index: 4, kind: input, shape index: {}]
  %s5 = inlined_call_operand.hbm [shape: f32[2,8,128], index: 5, kind: output, shape index: {}]
  %s6 = sld [smem:[#allocation0]]
  $region61: #{tpu_custom_call.1} parent=0
    _
  %s8 = ssub.s32 1, %s6
  %s9 = scalar_select 0, %s8, %s6
  $region1: #{tpu_custom_call.1} parent=0
    #allocation3 [shape = 'u8[8192]{0}', space=vmem, size = 0x2000, scoped, tag = 'output window, operand 0']
    #allocation4 [shape = 's32[2]{0}', space=sflag, size = 0x8, scoped, tag = 'scoped memory for tpu_custom_call.1']
    %10 = vsyncpa [#allocation4], 0
    %s11 = scalar_lea.sflag [#allocation4], 1
    %12 = vsyncpa %s11, 0
    loop: start=0, step=1, limit=6
    $region2: #{tpu_custom_call.1} parent=1 // loop_pre_header
      _
    $region3: #{tpu_custom_call.1} parent=1 // loop_header
      %s14 = sphi 0, %s18
      %p15 = scmp.ge.s32.totalorder %s14, 6
      %s21 = sphi 0, %s33
      %s22 = sphi 0, %s29
      %s23 = sphi 0, %s21
      %s24 = sphi 0, %s22
      %s25 = sphi 0, %s23
      %s26 = sphi 0, %s24
      %s44 = sphi 0, %s46
      %s47 = sphi 0, %s44
      %s48 = sphi 0, %s47
      %s64 = sphi 0, %s48
      %s68 = sphi 0, %s68
      %s70 = sphi 0, %s68
      %s71 = sphi 0, %s70
      %s85 = sphi 0, %s71
      %s99 = sphi 0, %s101
      %s102 = sphi 0, %s99
      %s103 = sphi 0, %s102
      %s119 = sphi 0, %s103
      %s123 = sphi 0, %s123
      %s125 = sphi 0, %s123
      %s126 = sphi 0, %s125
      %s140 = sphi 0, %s126
      %s154 = sphi 0, %s156
      %s157 = sphi 0, %s154
      %s158 = sphi 0, %s157
      %s174 = sphi 0, %s158
      %s180 = sphi 0, %s182
      %s183 = sphi 0, %s180
      %s184 = sphi 0, %s183
      %s200 = sphi 0, %s184
    $region4: #{tpu_custom_call.1} parent=1 // loop_header_branch
      %17 = sbr.rel (%p15) target = $region8
    $region5: #{tpu_custom_call.1} parent=1 // loop_body
      %s19 = ssub.s32 %s14, 1
      %s20 = ssub.s32 %s14, 2
      %s27 = sadd.s32 1, %s22
      %p28 = scmp.ge.s32.totalorder %s27, 2
      %s29 = scalar_select %p28, 0, %s27
      %s30 = sadd.s32 1, %s21
      %s31 = scalar_select %p28, %s30, %s21
      %p32 = scmp.ge.s32.totalorder %s31, 2
      %s33 = scalar_select %p32, 0, %s31
      %s34 = smul.u32 %s21, 2
      %s35 = sadd.s32 %s34, %s22
      %p36 = scmp.lt.s32.totalorder %s35, 3
      %s37 = scalar_select %p36, %s35, 3
      %s38 = smul.u32 %s33, 2
      %s39 = sadd.s32 %s38, %s29
      %p40 = scmp.lt.s32.totalorder %s39, 3
      %s41 = scalar_select %p40, %s39, 3
      %s42 = ssub.s32 %s37, %s41
      %p43 = scmp.eq.s32.totalorder %s42, 0
      %s45 = sadd.s32 %s44, 1
      %s46 = scalar_select %p43, %s44, %s45
      %p49 = pneg %p43
      %p50 = scmp.eq.s32.totalorder %s14, 3
      %p51 = por %p49, %p50
      %p52 = scmp.ne.s32.totalorder %s44, %s47
      %p53 = scmp.eq.s32.totalorder %s14, 0
      %p54 = por %p52, %p53
      %p55 = scmp.ne.s32.totalorder %s44, %s47
      %p56 = scmp.eq.s32.totalorder %s19, 3
      %p57 = por %p55, %p56
      %p58 = scmp.ne.s32.totalorder %s47, %s48
      %p59 = scmp.eq.s32.totalorder %s19, 0
      %p60 = por %p58, %p59
      %p61 = scmp.ne.s32.totalorder %s47, %s48
      %p62 = scmp.eq.s32.totalorder %s20, 3
      %p63 = por %p61, %p62
      %p65 = scmp.ne.s32.totalorder %s48, %s64
      %p66 = scmp.eq.s32.totalorder %s20, 0
      %p67 = por %p65, %p66
      %s69 = sadd.s32 %s68, 1
      %p72 = scmp.eq.s32.totalorder %s14, 3
      %p73 = scmp.ne.s32.totalorder %s68, %s70
      %p74 = scmp.eq.s32.totalorder %s14, 0
      %p75 = por %p73, %p74
      %p76 = scmp.ne.s32.totalorder %s68, %s70
      %p77 = scmp.eq.s32.totalorder %s19, 3
      %p78 = por %p76, %p77
      %p79 = scmp.ne.s32.totalorder %s70, %s71
      %p80 = scmp.eq.s32.totalorder %s19, 0
      %p81 = por %p79, %p80
      %p82 = scmp.ne.s32.totalorder %s70, %s71
      %p83 = scmp.eq.s32.totalorder %s20, 3
      %p84 = por %p82, %p83
      %p86 = scmp.ne.s32.totalorder %s71, %s85
      %p87 = scmp.eq.s32.totalorder %s20, 0
      %p88 = por %p86, %p87
      %s89 = smul.u32 %s21, 2
      %s90 = sadd.s32 %s89, %s22
      %p91 = scmp.lt.s32.totalorder %s90, 3
      %s92 = scalar_select %p91, %s90, 3
      %s93 = smul.u32 %s33, 2
      %s94 = sadd.s32 %s93, %s29
      %p95 = scmp.lt.s32.totalorder %s94, 3
      %s96 = scalar_select %p95, %s94, 3
      %s97 = ssub.s32 %s92, %s96
      %p98 = scmp.eq.s32.totalorder %s97, 0
      %s100 = sadd.s32 %s99, 1
      %s101 = scalar_select %p98, %s99, %s100
      %p104 = pneg %p98
      %p105 = scmp.eq.s32.totalorder %s14, 3
      %p106 = por %p104, %p105
      %p107 = scmp.ne.s32.totalorder %s99, %s102
      %p108 = scmp.eq.s32.totalorder %s14, 0
      %p109 = por %p107, %p108
      %p110 = scmp.ne.s32.totalorder %s99, %s102
      %p111 = scmp.eq.s32.totalorder %s19, 3
      %p112 = por %p110, %p111
      %p113 = scmp.ne.s32.totalorder %s102, %s103
      %p114 = scmp.eq.s32.totalorder %s19, 0
      %p115 = por %p113, %p114
      %p116 = scmp.ne.s32.totalorder %s102, %s103
      %p117 = scmp.eq.s32.totalorder %s20, 3
      %p118 = por %p116, %p117
      %p120 = scmp.ne.s32.totalorder %s103, %s119
      %p121 = scmp.eq.s32.totalorder %s20, 0
      %p122 = por %p120, %p121
      %s124 = sadd.s32 %s123, 1
      %p127 = scmp.eq.s32.totalorder %s14, 3
      %p128 = scmp.ne.s32.totalorder %s123, %s125
      %p129 = scmp.eq.s32.totalorder %s14, 0
      %p130 = por %p128, %p129
      %p131 = scmp.ne.s32.totalorder %s123, %s125
      %p132 = scmp.eq.s32.totalorder %s19, 3
      %p133 = por %p131, %p132
      %p134 = scmp.ne.s32.totalorder %s125, %s126
      %p135 = scmp.eq.s32.totalorder %s19, 0
      %p136 = por %p134, %p135
      %p137 = scmp.ne.s32.totalorder %s125, %s126
      %p138 = scmp.eq.s32.totalorder %s20, 3
      %p139 = por %p137, %p138
      %p141 = scmp.ne.s32.totalorder %s126, %s140
      %p142 = scmp.eq.s32.totalorder %s20, 0
      %p143 = por %p141, %p142
      %s144 = smul.u32 %s21, 2
      %s145 = sadd.s32 %s144, %s22
      %p146 = scmp.lt.s32.totalorder %s145, 3
      %s147 = scalar_select %p146, %s145, 3
      %s148 = smul.u32 %s33, 2
      %s149 = sadd.s32 %s148, %s29
      %p150 = scmp.lt.s32.totalorder %s149, 3
      %s151 = scalar_select %p150, %s149, 3
      %s152 = ssub.s32 %s147, %s151
      %p153 = scmp.eq.s32.totalorder %s152, 0
      %s155 = sadd.s32 %s154, 1
      %s156 = scalar_select %p153, %s154, %s155
      %p159 = pneg %p153
      %p160 = scmp.eq.s32.totalorder %s14, 3
      %p161 = por %p159, %p160
      %p162 = scmp.ne.s32.totalorder %s154, %s157
      %p163 = scmp.eq.s32.totalorder %s14, 0
      %p164 = por %p162, %p163
      %p165 = scmp.ne.s32.totalorder %s154, %s157
      %p166 = scmp.eq.s32.totalorder %s19, 3
      %p167 = por %p165, %p166
      %p168 = scmp.ne.s32.totalorder %s157, %s158
      %p169 = scmp.eq.s32.totalorder %s19, 0
      %p170 = por %p168, %p169
      %p171 = scmp.ne.s32.totalorder %s157, %s158
      %p172 = scmp.eq.s32.totalorder %s20, 3
      %p173 = por %p171, %p172
      %p175 = scmp.ne.s32.totalorder %s158, %s174
      %p176 = scmp.eq.s32.totalorder %s20, 0
      %p177 = por %p175, %p176
      %s178 = ssub.s32 %s21, %s33
      %p179 = scmp.eq.s32.totalorder %s178, 0
      %s181 = sadd.s32 %s180, 1
      %s182 = scalar_select %p179, %s180, %s181
      %p185 = pneg %p179
      %p186 = scmp.eq.s32.totalorder %s14, 3
      %p187 = por %p185, %p186
      %p188 = scmp.ne.s32.totalorder %s180, %s183
      %p189 = scmp.eq.s32.totalorder %s14, 0
      %p190 = por %p188, %p189
      %p191 = scmp.ne.s32.totalorder %s180, %s183
      %p192 = scmp.eq.s32.totalorder %s19, 3
      %p193 = por %p191, %p192
      %p194 = scmp.ne.s32.totalorder %s183, %s184
      %p195 = scmp.eq.s32.totalorder %s19, 0
      %p196 = por %p194, %p195
      %p197 = scmp.ne.s32.totalorder %s183, %s184
      %p198 = scmp.eq.s32.totalorder %s20, 3
      %p199 = por %p197, %p198
      %p201 = scmp.ne.s32.totalorder %s184, %s200
      %p202 = scmp.eq.s32.totalorder %s20, 0
      %p203 = por %p201, %p202
      %p204 = scmp.le.s32.totalorder 1, %s14
      %p205 = scmp.lt.s32.totalorder %s14, 5
      %p206 = pnand %p204, %p205
      %p207 = pneg %p206
      // Predicated region
      $region9: #{tpu_custom_call.1} parent=5 // pred_check
        _
      $region10: #{tpu_custom_call.1} parent=5 // pred_check_branch
        %209 = sbr.rel (%p206) target = $region12
      $region11: #{tpu_custom_call.1} parent=5 // pred_region
        %s210 = ssub.s32 %s14, 1
        // Predicated region
        $region13: #{tpu_custom_call.1} parent=11 // pred_check
          %p211 = pneg %p81
        $region14: #{tpu_custom_call.1} parent=11 // pred_check_branch
          %213 = sbr.rel (%p211) target = $region16
        $region15: #{tpu_custom_call.1} parent=11 // pred_region
          _
        $region16: #{tpu_custom_call.1} parent=11 // pred_fallthru
          _
        // Predicated region
        $region17: #{tpu_custom_call.1} parent=11 // pred_check
          %p214 = pneg %p136
        $region18: #{tpu_custom_call.1} parent=11 // pred_check_branch
          %216 = sbr.rel (%p214) target = $region20
        $region19: #{tpu_custom_call.1} parent=11 // pred_region
          _
        $region20: #{tpu_custom_call.1} parent=11 // pred_fallthru
          _
      $region12: #{tpu_custom_call.1} parent=5 // pred_fallthru
        _
      %p217 = scmp.lt.s32.totalorder %s14, 4
      // Predicated region
      $region21: #{tpu_custom_call.1} parent=5 // pred_check
        %p218 = pneg %p217
      $region22: #{tpu_custom_call.1} parent=5 // pred_check_branch
        %220 = sbr.rel (%p218) target = $region24
      $region23: #{tpu_custom_call.1} parent=5 // pred_region
        // Predicated region
        $region25: #{tpu_custom_call.1} parent=23 // pred_check
          %p221 = pneg %p54
        $region26: #{tpu_custom_call.1} parent=23 // pred_check_branch
          %223 = sbr.rel (%p221) target = $region28
        $region27: #{tpu_custom_call.1} parent=23 // pred_region
          %s224 = smul.u32 %s21, 2
          %s225 = sadd.s32 %s224, %s22
          %p226 = scmp.lt.s32.totalorder %s225, 3
          %s227 = scalar_select %p226, %s225, 3
          %s228 = smul.u32 4, %s227
          %p229 = scmp.lt.s32.totalorder %s228, 15
          %s230 = scalar_select %p229, %s228, 15
          %s231 = smul.addr %s230, 8
          %s232 = scalar_lea.vmem %s0, %s231
          %s233 = smul.u32 %s21, 2
          %s234 = sadd.s32 %s233, %s22
          %p235 = scmp.lt.s32.totalorder %s234, 3
          %s236 = scalar_select %p235, %s234, 3
          %s237 = smul.u32 4, %s236
        $region28: #{tpu_custom_call.1} parent=23 // pred_fallthru
          _
        // Predicated region
        $region29: #{tpu_custom_call.1} parent=23 // pred_check
          %p238 = pneg %p109
        $region30: #{tpu_custom_call.1} parent=23 // pred_check_branch
          %240 = sbr.rel (%p238) target = $region32
        $region31: #{tpu_custom_call.1} parent=23 // pred_region
          %s241 = smul.u32 %s21, 2
          %s242 = sadd.s32 %s241, %s22
          %p243 = scmp.lt.s32.totalorder %s242, 3
          %s244 = scalar_select %p243, %s242, 3
          %s245 = smul.u32 4, %s244
          %p246 = scmp.lt.s32.totalorder %s245, 15
          %s247 = scalar_select %p246, %s245, 15
          %s248 = smul.addr %s247, 8
          %s249 = scalar_lea.vmem %s2, %s248
          %s250 = smul.u32 %s21, 2
          %s251 = sadd.s32 %s250, %s22
          %p252 = scmp.lt.s32.totalorder %s251, 3
          %s253 = scalar_select %p252, %s251, 3
          %s254 = smul.u32 4, %s253
        $region32: #{tpu_custom_call.1} parent=23 // pred_fallthru
          _
        // Predicated region
        $region33: #{tpu_custom_call.1} parent=23 // pred_check
          %p255 = pneg %p164
        $region34: #{tpu_custom_call.1} parent=23 // pred_check_branch
          %257 = sbr.rel (%p255) target = $region36
        $region35: #{tpu_custom_call.1} parent=23 // pred_region
          %s258 = smul.u32 %s21, 2
          %s259 = sadd.s32 %s258, %s22
          %p260 = scmp.lt.s32.totalorder %s259, 3
          %s261 = scalar_select %p260, %s259, 3
          %s262 = smul.u32 4, %s261
          %p263 = scmp.lt.s32.totalorder %s262, 15
          %s264 = scalar_select %p263, %s262, 15
          %s265 = smul.addr %s264, 8
          %s266 = scalar_lea.vmem %s4, %s265
          %s267 = smul.u32 %s21, 2
          %s268 = sadd.s32 %s267, %s22
          %p269 = scmp.lt.s32.totalorder %s268, 3
          %s270 = scalar_select %p269, %s268, 3
          %s271 = smul.u32 4, %s270
        $region36: #{tpu_custom_call.1} parent=23 // pred_fallthru
          _
      $region24: #{tpu_custom_call.1} parent=5 // pred_fallthru
        _
      %p272 = scmp.le.s32.totalorder 1, %s14
      %p273 = scmp.lt.s32.totalorder %s14, 5
      %p274 = pnand %p272, %p273
      %p275 = pneg %p274
      // Predicated region
      $region37: #{tpu_custom_call.1} parent=5 // pred_check
        _
      $region38: #{tpu_custom_call.1} parent=5 // pred_check_branch
        %277 = sbr.rel (%p274) target = $region40
      $region39: #{tpu_custom_call.1} parent=5 // pred_region
        %s278 = ssub.s32 %s14, 1
        %s279 = smul.u32 %s23, 2
        %s280 = sadd.s32 %s279, %s24
        %p281 = scmp.lt.s32.totalorder %s280, 3
        %s282 = scalar_select %p281, %s280, 3
        %s283 = smul.u32 4, %s282
        %p284 = scmp.lt.s32.totalorder %s283, 15
        %s285 = scalar_select %p284, %s283, 15
        %s286 = smul.addr %s285, 8
        %s287 = scalar_lea.vmem %s0, %s286
        %p288 = pneg %p60
        %p289 = pneg %p57
        %p290 = pneg %p81
        %p291 = pneg %p78
        %s292 = smul.u32 %s23, 2
        %s293 = sadd.s32 %s292, %s24
        %p294 = scmp.lt.s32.totalorder %s293, 3
        %s295 = scalar_select %p294, %s293, 3
        %s296 = smul.u32 4, %s295
        %p297 = scmp.lt.s32.totalorder %s296, 15
        %s298 = scalar_select %p297, %s296, 15
        %s299 = smul.addr %s298, 8
        %s300 = scalar_lea.vmem %s2, %s299
        %p301 = pneg %p115
        %p302 = pneg %p112
        %p303 = pneg %p136
        %p304 = pneg %p133
        %s305 = smul.u32 %s23, 2
        %s306 = sadd.s32 %s305, %s24
        %p307 = scmp.lt.s32.totalorder %s306, 3
        %s308 = scalar_select %p307, %s306, 3
        %s309 = smul.u32 4, %s308
        %p310 = scmp.lt.s32.totalorder %s309, 15
        %s311 = scalar_select %p310, %s309, 15
        %s312 = smul.addr %s311, 8
        %s313 = scalar_lea.vmem %s4, %s312
        %p314 = pneg %p170
        %p315 = pneg %p167
        %p316 = pneg %p196
        %p317 = pneg %p193
        %s318 = sand.u32 %s183, 1
        %s319 = scalar_lea.sflag [#allocation4], %s318
        %s320 = sand.u32 %s183, 1
        %s321 = smul.addr %s320, 8
        %s322 = scalar_lea.vmem [#allocation3], %s321
        %s323 = smul.u32 %s23, 2
        %s324 = sadd.s32 %s323, %s24
        %p325 = scmp.lt.s32.totalorder %s324, 3
        %s326 = scalar_select %p325, %s324, 3
        %s327 = smul.u32 4, %s326
        %p328 = scmp.lt.s32.totalorder %s327, 15
        %s329 = scalar_select %p328, %s327, 15
        %s330 = smul.addr %s329, 8
        %s331 = scalar_lea.vmem %s0, %s330
        %s332 = smul.u32 %s23, 2
        %s333 = sadd.s32 %s332, %s24
        %p334 = scmp.lt.s32.totalorder %s333, 3
        %s335 = scalar_select %p334, %s333, 3
        %s336 = smul.u32 4, %s335
        %s337 = smul.u32 %s23, 2
        %s338 = sadd.s32 %s337, %s24
        %p339 = scmp.lt.s32.totalorder %s338, 3
        %s340 = scalar_select %p339, %s338, 3
        %s341 = smul.u32 4, %s340
        %p342 = scmp.lt.s32.totalorder %s341, 15
        %s343 = scalar_select %p342, %s341, 15
        %s344 = smul.addr %s343, 8
        %s345 = scalar_lea.vmem %s2, %s344
        %s346 = smul.u32 %s23, 2
        %s347 = sadd.s32 %s346, %s24
        %p348 = scmp.lt.s32.totalorder %s347, 3
        %s349 = scalar_select %p348, %s347, 3
        %s350 = smul.u32 4, %s349
        %s351 = smul.u32 %s23, 2
        %s352 = sadd.s32 %s351, %s24
        %p353 = scmp.lt.s32.totalorder %s352, 3
        %s354 = scalar_select %p353, %s352, 3
        %s355 = smul.u32 4, %s354
        %p356 = scmp.lt.s32.totalorder %s355, 15
        %s357 = scalar_select %p356, %s355, 15
        %s358 = smul.addr %s357, 8
        %s359 = scalar_lea.vmem %s4, %s358
        %s360 = smul.u32 %s23, 2
        %s361 = sadd.s32 %s360, %s24
        %p362 = scmp.lt.s32.totalorder %s361, 3
        %s363 = scalar_select %p362, %s361, 3
        %s364 = smul.u32 4, %s363
        %p365 = scmp.eq.s32.totalorder %s24, 0
        // Predicated region
        $region41: #{tpu_custom_call.1} parent=39 // pred_check
          %p366 = pneg %p365
        $region42: #{tpu_custom_call.1} parent=39 // pred_check_branch
          %368 = sbr.rel (%p366) target = $region44
        $region43: #{tpu_custom_call.1} parent=39 // pred_region
          %369 = vst [vmem:[#allocation2] sm:$0x1] 0.0
        $region44: #{tpu_custom_call.1} parent=39 // pred_fallthru
          _
        %v370 = vld [vmem:[%s359] sm:$0xff]
        %v371 = vld [vmem:[%s359 + $0x8] sm:$0xff]
        %v372 = vld [vmem:[%s359 + $0x10] sm:$0xff]
        %v373 = vld [vmem:[%s359 + $0x18] sm:$0xff]
        %v374 = vld [vmem:[%s331] sm:$0xff]
        %v375 = vld [vmem:[%s331 + $0x8] sm:$0xff]
        %v376 = vld [vmem:[%s331 + $0x10] sm:$0xff]
        %v377 = vld [vmem:[%s331 + $0x18] sm:$0xff]
        %379 = vset.pattern.permute.xlu0 0
        %380 = vperm.xlu0 %379, %v374
        %v381 = vpop.permute.xlu0 %380
        %384 = vset.pattern.permute.xlu0 0
        %385 = vperm.xlu0 %384, %v375
        %v386 = vpop.permute.xlu0 %385
        %389 = vset.pattern.permute.xlu0 0
        %390 = vperm.xlu0 %389, %v376
        %v391 = vpop.permute.xlu0 %390
        %394 = vset.pattern.permute.xlu0 0
        %395 = vperm.xlu0 %394, %v377
        %v396 = vpop.permute.xlu0 %395
        %v398 = vsub.f32 %v370, %v381
        %v399 = vsub.f32 %v371, %v386
        %v400 = vsub.f32 %v372, %v391
        %v401 = vsub.f32 %v373, %v396
        %v402 = vmax.f32 %v398, 0.0
        %v403 = vmax.f32 %v399, 0.0
        %v404 = vmax.f32 %v400, 0.0
        %v405 = vmax.f32 %v401, 0.0
        %v406 = vld [vmem:[%s1] sm:$0x1]
        %v408 = vlaneseq
        %v409 = vshrl.u32 %v408, 7
        %v410 = vsub.s32 0, %v409
        %v411 = vrot.slane %v406, %v410
        %v413 = vsub.f32 %v370, %v411
        %v414 = vsub.f32 %v371, %v411
        %v415 = vsub.f32 %v372, %v411
        %v416 = vsub.f32 %v373, %v411
        %v417 = vmax.f32 %v413, 0.0
        %v418 = vmax.f32 %v414, 0.0
        %v419 = vmax.f32 %v415, 0.0
        %v420 = vmax.f32 %v416, 0.0
        %v421 = vadd.f32 %v402, %v417
        %v422 = vadd.f32 %v403, %v418
        %v423 = vadd.f32 %v404, %v419
        %v424 = vadd.f32 %v405, %v420
        %v425 = vld [vmem:[%s345] sm:$0xff]
        %v426 = vld [vmem:[%s345 + $0x8] sm:$0xff]
        %v427 = vld [vmem:[%s345 + $0x10] sm:$0xff]
        %v428 = vld [vmem:[%s345 + $0x18] sm:$0xff]
        %v429 = vld [vmem:[%s3] sm:$0x1]
        %430 = vset.pattern.permute.xlu0 0
        %431 = vperm.xlu0 %430, %v425
        %v432 = vpop.permute.xlu0 %431
        %433 = vset.pattern.permute.xlu0 0
        %434 = vperm.xlu0 %433, %v426
        %v435 = vpop.permute.xlu0 %434
        %436 = vset.pattern.permute.xlu0 0
        %437 = vperm.xlu0 %436, %v427
        %v438 = vpop.permute.xlu0 %437
        %439 = vset.pattern.permute.xlu0 0
        %440 = vperm.xlu0 %439, %v428
        %v441 = vpop.permute.xlu0 %440
        %v442 = vlaneseq
        %v443 = vshrl.u32 %v442, 7
        %v444 = vsub.s32 0, %v443
        %v445 = vrot.slane %v429, %v444
        %vm446 = vcmp.eq.s32.totalorder %v432, %v445
        %vm447 = vcmp.eq.s32.totalorder %v435, %v445
        %vm448 = vcmp.eq.s32.totalorder %v438, %v445
        %vm449 = vcmp.eq.s32.totalorder %v441, %v445
        %v450 = vsel %vm446, 8.0, 0.53333336
        %v451 = vsel %vm447, 8.0, 0.53333336
        %v452 = vsel %vm448, 8.0, 0.53333336
        %v453 = vsel %vm449, 8.0, 0.53333336
        %v454 = vmul.f32 %v421, %v450
        %v455 = vmul.f32 %v422, %v451
        %v456 = vmul.f32 %v423, %v452
        %v457 = vmul.f32 %v424, %v453
        %v458 = vld [vmem:[#allocation2] sm:$0x1]
        %v459 = vadd.f32 %v454, %v455
        %v460 = vadd.f32 %v459, %v456
        %v461 = vadd.f32 %v460, %v457
        %v462 = vrot.slane %v461, 4
        %v463 = vadd.f32 %v461, %v462
        %v464 = vrot.slane %v463, 2
        %v465 = vadd.f32 %v463, %v464
        %v466 = vrot.slane %v465, 1
        %v467 = vadd.f32 %v465, %v466
        %v468 = vadd.f32 %v458, %v467
        %469 = vst [vmem:[#allocation2] sm:$0x1] %v468
        %p470 = scmp.eq.s32.totalorder %s24, 1
        // Predicated region
        $region45: #{tpu_custom_call.1} parent=39 // pred_check
          %p471 = pneg %p470
        $region46: #{tpu_custom_call.1} parent=39 // pred_check_branch
          %473 = sbr.rel (%p471) target = $region48
        $region47: #{tpu_custom_call.1} parent=39 // pred_region
          %v474 = vld [vmem:[#allocation2] sm:$0x1]
          %vm475 = vcmask 1040384
          %v476 = vsel %vm475, %v474, 0.0
          %477 = vadd.xlane.f32.xlu0 %v476
          %v478 = vpop.xlane.xlu0 %477
          %v479 = vrot.slane %v478, 4
          %v480 = vadd.f32 %v478, %v479
          %v481 = vrot.slane %v480, 2
          %v482 = vadd.f32 %v480, %v481
          %v483 = vrot.slane %v482, 1
          %v484 = vadd.f32 %v482, %v483
          %s485 = vtos %v484
          %s486 = smul.f32 %s485, 6.1035156e-05
          %v487 = vstv %s486
          %488 = vst [vmem:[%s322] sm:$0xff] %v487
        $region48: #{tpu_custom_call.1} parent=39 // pred_fallthru
          _
        %s489 = sand.u32 %s183, 1
        %s490 = scalar_lea.sflag [#allocation4], %s489
        %s491 = sand.u32 %s183, 1
        %s492 = smul.addr %s491, 8
        %s493 = scalar_lea.vmem [#allocation3], %s492
        // Predicated region
        $region49: #{tpu_custom_call.1} parent=39 // pred_check
          %p494 = pneg %p193
        $region50: #{tpu_custom_call.1} parent=39 // pred_check_branch
          %496 = sbr.rel (%p494) target = $region52
        $region51: #{tpu_custom_call.1} parent=39 // pred_region
          %s498 = ssub.s32 128, 128
          %499 = vsyncadd %s490, %s498
          %s500 = smul.addr %s23, 128
          %s501 = scalar_lea.hbm %s5, %s500
          %s503 = sshll.u32 %s493, 4
          %s504 = int_to_ptr.vmem [resolvable:$true] %s503
          %506 = dma.vmem_to_hbm [thread:$0]  %s504, 128, %s501, %s490
        $region52: #{tpu_custom_call.1} parent=39 // pred_fallthru
          _
      $region40: #{tpu_custom_call.1} parent=5 // pred_fallthru
        _
      %p507 = scmp.le.s32.totalorder 2, %s14
      // Predicated region
      $region53: #{tpu_custom_call.1} parent=5 // pred_check
        %p508 = pneg %p507
      $region54: #{tpu_custom_call.1} parent=5 // pred_check_branch
        %510 = sbr.rel (%p508) target = $region56
      $region55: #{tpu_custom_call.1} parent=5 // pred_region
        %s511 = ssub.s32 %s14, 2
        // Predicated region
        $region57: #{tpu_custom_call.1} parent=55 // pred_check
          %p512 = pneg %p199
        $region58: #{tpu_custom_call.1} parent=55 // pred_check_branch
          %514 = sbr.rel (%p512) target = $region60
        $region59: #{tpu_custom_call.1} parent=55 // pred_region
          %s515 = sand.u32 %s184, 1
          %s516 = scalar_lea.sflag [#allocation4], %s515
          %s517 = sand.u32 %s184, 1
          %s518 = smul.addr %s517, 8
          %s519 = scalar_lea.vmem [#allocation3], %s518
          %520 = dma.done %s516, 128
        $region60: #{tpu_custom_call.1} parent=55 // pred_fallthru
          _
      $region56: #{tpu_custom_call.1} parent=5 // pred_fallthru
        _
    $region6: #{tpu_custom_call.1} parent=1 // loop_footer
      %s18 = sadd.s32 1, %s14
    $region7: #{tpu_custom_call.1} parent=1 // loop_footer_branch
      %13 = sbr.rel target = $region3
    $region8: #{tpu_custom_call.1} parent=1 // loop_exit
      _
    %521 = vsyncpa [#allocation4], 1
    %s522 = scalar_lea.sflag [#allocation4], 1
    %523 = vsyncpa %s522, 1

</llo_original>
